<compile_context>
chip_gen: v5e
topology: v5e:2x2
jax: 0.10.0
libtpu: 0.0.40
codegen_flags: <defaults>
</compile_context>

<pallas_src>
import functools

import jax
import jax.numpy as jnp
from jax import lax
from jax.experimental import pallas as pl
from jax.experimental.pallas import tpu as pltpu


def _round_up(x, m):
    return ((x + m - 1) // m) * m


def birnn_fc_kernel(T, Bt, Hp,
                    xproj_ref,   # (T, Bt, 2*Hp) f32  gathered input projections
                                 #   [:, :, :Hp]  = fwd dir at time t
                                 #   [:, :, Hp:]  = bwd dir at time T-1-t (pre-reversed)
                    whh_ref,     # (2*Hp, 2*Hp) bf16  block-diag [Whh_f^T ; Whh_b^T]
                    fcw_ref,     # (2*Hp, 128)  bf16  fc weights, only column 0 non-zero
                    fcb_ref,     # (1, 128)     f32   fc bias,    only column 0 non-zero
                    out_ref):    # (Bt, 128)    f32   sigmoid(logits) in column 0
    # Fused fwd/bwd recurrence: one K=2*Hp matmul per step (block-diagonal Whh keeps
    # the two directions independent). h carried in f32; bf16 only as MXU operand.
    def step(t, h):
        hh = jnp.dot(h.astype(jnp.bfloat16), whh_ref[...],
                     preferred_element_type=jnp.float32)
        return jnp.tanh(xproj_ref[t] + hh)

    h0 = jnp.zeros((Bt, 2 * Hp), jnp.float32)
    h = lax.fori_loop(0, T, step, h0, unroll=min(T, 8))

    # fc + sigmoid: single matmul (fwd/bwd halves already adjacent in h), lane-dense
    # (Bt, 128) output block so stores are unmasked.
    logits = (jnp.dot(h.astype(jnp.bfloat16), fcw_ref[...],
                      preferred_element_type=jnp.float32)
              + fcb_ref[...])
    out_ref[...] = jax.nn.sigmoid(logits)


def rnn_model_forward(token_ids, embedding_matrix, params):
    """token_ids: (B, T) int32.  Returns sigmoid(fc(hn)) of shape (B, 1) float32."""
    B, T = token_ids.shape
    H = params["whh_f"].shape[0]

    Hp = _round_up(H, 128)            # lane alignment for the hidden dim
    if B <= 128:
        Bp = _round_up(max(B, 8), 8)  # sublane alignment
        Bt = Bp                       # single batch tile
    else:
        Bt = 128
        Bp = _round_up(B, Bt)
    FC_N = 128                        # lane-dense output width (logit in col 0)

    emb = embedding_matrix.astype(jnp.float32)

    # Precomputed frozen-embedding projection tables (eval-only): row v holds
    # emb[v] @ Wih_dir^T + (bih_dir + bhh_dir), zero-padded to Hp lanes so the
    # padded hidden lanes stay exactly 0 through tanh.
    tab_f = jnp.pad(emb @ params["wih_f"].T + params["bih_f"] + params["bhh_f"],
                    ((0, 0), (0, Hp - H)))
    tab_b = jnp.pad(emb @ params["wih_b"].T + params["bih_b"] + params["bhh_b"],
                    ((0, 0), (0, Hp - H)))

    # Gather per-token projections; reverse time for the backward direction so both
    # halves of the fused recurrence share the same time index.
    xf = jnp.take(tab_f, token_ids, axis=0)             # (B, T, Hp)
    xb = jnp.take(tab_b, token_ids[:, ::-1], axis=0)    # (B, T, Hp), time-reversed
    xproj = jnp.concatenate([xf, xb], axis=-1)          # (B, T, 2*Hp)
    xproj = jnp.transpose(xproj, (1, 0, 2))             # (T, B, 2*Hp) time-major
    xproj = jnp.pad(xproj, ((0, 0), (0, Bp - B), (0, 0)))  # (T, Bp, 2*Hp)

    # Block-diagonal recurrent weight (bf16 MXU operand). Zero padding keeps padded
    # hidden lanes at exactly 0; padded batch rows (xproj rows all-zero) also stay 0.
    whh = jnp.zeros((2 * Hp, 2 * Hp), jnp.float32)
    whh = whh.at[:H, :H].set(params["whh_f"].T)
    whh = whh.at[Hp:Hp + H, Hp:Hp + H].set(params["whh_b"].T)
    whh = whh.astype(jnp.bfloat16)

    # fc: rows [0:H) multiply h_fwd, rows [Hp:Hp+H) multiply h_bwd; only col 0 real.
    fc_w = jnp.zeros((2 * Hp, FC_N), jnp.float32)
    fc_w = fc_w.at[:H, 0].set(params["fc_w"][0, :H])
    fc_w = fc_w.at[Hp:Hp + H, 0].set(params["fc_w"][0, H:])
    fc_w = fc_w.astype(jnp.bfloat16)
    fc_b = jnp.zeros((1, FC_N), jnp.float32).at[0, 0].set(params["fc_b"][0])

    kernel = functools.partial(birnn_fc_kernel, T, Bt, Hp)

    out_p = pl.pallas_call(
        kernel,
        out_shape=jax.ShapeDtypeStruct((Bp, FC_N), jnp.float32),
        grid=(Bp // Bt,),
        in_specs=[
            pl.BlockSpec((T, Bt, 2 * Hp), lambda b: (0, b, 0)),   # xproj, batch-tiled
            pl.BlockSpec((2 * Hp, 2 * Hp), lambda b: (0, 0)),     # whh (resident)
            pl.BlockSpec((2 * Hp, FC_N), lambda b: (0, 0)),       # fc_w (resident)
            pl.BlockSpec((1, FC_N), lambda b: (0, 0)),            # fc_b (resident)
        ],
        out_specs=pl.BlockSpec((Bt, FC_N), lambda b: (b, 0)),
        compiler_params=pltpu.CompilerParams(
            dimension_semantics=("parallel",),
            vmem_limit_bytes=32 * 1024 * 1024),
    )(xproj, whh, fc_w, fc_b)

    # Dropout(0.5) is identity in eval mode; slice off padding / dummy lanes.
    return out_p[:B, :1]


def rnn_model_reference(token_ids, embedding_matrix, params):
    """Pure-JAX reference matching the PyTorch module (eval mode)."""
    x = jnp.take(embedding_matrix, token_ids, axis=0).astype(jnp.float32)  # (B,T,E)
    B, T, _ = x.shape
    H = params["whh_f"].shape[0]
    h_f = jnp.zeros((B, H), jnp.float32)
    h_b = jnp.zeros((B, H), jnp.float32)
    for t in range(T):
        h_f = jnp.tanh(x[:, t] @ params["wih_f"].T + params["bih_f"]
                       + h_f @ params["whh_f"].T + params["bhh_f"])
    for t in range(T - 1, -1, -1):
        h_b = jnp.tanh(x[:, t] @ params["wih_b"].T + params["bih_b"]
                       + h_b @ params["whh_b"].T + params["bhh_b"])
    hn = jnp.concatenate([h_f, h_b], axis=-1)
    return jax.nn.sigmoid(hn @ params["fc_w"].T + params["fc_b"])


def init_params(key, embedding_dim, hidden_size):
    """Deterministic init matching PyTorch nn.RNN/nn.Linear shapes."""
    E, H = embedding_dim, hidden_size
    k = 1.0 / jnp.sqrt(jnp.float32(H))
    keys = jax.random.split(key, 11)
    u = lambda kk, shape: jax.random.uniform(kk, shape, jnp.float32, -k, k)
    return {
        "wih_f": u(keys[0], (H, E)),
        "whh_f": u(keys[1], (H, H)),
        "bih_f": u(keys[2], (H,)),
        "bhh_f": u(keys[3], (H,)),
        "wih_b": u(keys[4], (H, E)),
        "whh_b": u(keys[5], (H, H)),
        "bih_b": u(keys[6], (H,)),
        "bhh_b": u(keys[7], (H,)),
        "fc_w": u(keys[8], (1, 2 * H)),
        "fc_b": u(keys[9], (1,)),
    }


if __name__ == "__main__":
    B, T = 2, 8          # batch, sequence length
    E, H = 32, 32        # embedding_dim, hidden_size
    VOCAB = 50

    key = jax.random.PRNGKey(0)
    k_emb, k_ids, k_params = jax.random.split(key, 3)

    embedding_matrix = jax.random.normal(k_emb, (VOCAB, E), jnp.float32)
    token_ids = jax.random.randint(k_ids, (B, T), 0, VOCAB, jnp.int32)
    params = init_params(k_params, E, H)

    out = rnn_model_forward(token_ids, embedding_matrix, params)
    out = jax.block_until_ready(out)

    ref = jax.block_until_ready(rnn_model_reference(token_ids, embedding_matrix, params))

    assert out.shape == (B, 1)
    assert bool(jnp.all((out >= 0.0) & (out <= 1.0)))
    # bf16 MXU operands in the recurrence -> slightly looser tolerance than pure f32.
    assert bool(jnp.allclose(out, ref, atol=2e-2, rtol=2e-2)), (out, ref)
    print("KERNEL_OK")
</pallas_src>

<mosaic_0001>
module attributes {stable_mosaic.version = 11 : i64} {
  func.func @birnn_fc_kernel(%arg0: i32, %arg1: memref<8x8x256xf32, #tpu.memory_space<vmem>>, %arg2: memref<256x256xbf16, #tpu.memory_space<vmem>>, %arg3: memref<256x128xbf16, #tpu.memory_space<vmem>>, %arg4: memref<1x128xf32, #tpu.memory_space<vmem>>, %arg5: memref<8x128xf32, #tpu.memory_space<vmem>>) attributes {dimension_semantics = [#tpu.dimension_semantics<parallel>], iteration_bounds = array<i64: 1>, scalar_prefetch = 0 : i64, scratch_operands = 0 : i64, tpu.core_type = #tpu.core_type<tc>, window_params = [{transform_indices = @transform_0, window_bounds = array<i64: 8, 8, 256>}, {pipeline_mode = #tpu.pipeline_mode<synchronous>, transform_indices = @transform_1, window_bounds = array<i64: 256, 256>}, {pipeline_mode = #tpu.pipeline_mode<synchronous>, transform_indices = @transform_2, window_bounds = array<i64: 256, 128>}, {pipeline_mode = #tpu.pipeline_mode<synchronous>, transform_indices = @transform_3, window_bounds = array<i64: 1, 128>}, {transform_indices = @transform_4, window_bounds = array<i64: 8, 128>}]} {
    %cst = arith.constant 0.000000e+00 : f32
    %0 = vector.broadcast %cst : f32 to vector<8x256xf32>
    %c0_i32 = arith.constant 0 : i32
    %1 = arith.truncf %0 : vector<8x256xf32> to vector<8x256xbf16>
    %c0 = arith.constant 0 : index
    %c0_0 = arith.constant 0 : index
    %2 = vector.load %arg2[%c0, %c0_0] : memref<256x256xbf16, #tpu.memory_space<vmem>>, vector<256x256xbf16>
    %cst_1 = arith.constant dense<0.000000e+00> : vector<8x256xf32>
    %3 = tpu.matmul %1, %2, %cst_1 {dimension_numbers = #tpu.dot_dimension_numbers<[1], [0], [0], [1], [0, 0, 1, 1], [], []>} : vector<8x256xbf16>, vector<256x256xbf16>, vector<8x256xf32> -> vector<8x256xf32>
    %4 = arith.index_cast %c0_i32 : i32 to index
    %c0_2 = arith.constant 0 : index
    %c0_3 = arith.constant 0 : index
    %5 = vector.load %arg1[%4, %c0_2, %c0_3] : memref<8x8x256xf32, #tpu.memory_space<vmem>>, vector<1x8x256xf32>
    %6 = vector.shape_cast %5 : vector<1x8x256xf32> to vector<8x256xf32>
    %7 = arith.addf %6, %3 : vector<8x256xf32>
    %8 = math.tanh %7 : vector<8x256xf32>
    %c1_i32 = arith.constant 1 : i32
    %9 = arith.truncf %8 : vector<8x256xf32> to vector<8x256xbf16>
    %c0_4 = arith.constant 0 : index
    %c0_5 = arith.constant 0 : index
    %10 = vector.load %arg2[%c0_4, %c0_5] : memref<256x256xbf16, #tpu.memory_space<vmem>>, vector<256x256xbf16>
    %cst_6 = arith.constant dense<0.000000e+00> : vector<8x256xf32>
    %11 = tpu.matmul %9, %10, %cst_6 {dimension_numbers = #tpu.dot_dimension_numbers<[1], [0], [0], [1], [0, 0, 1, 1], [], []>} : vector<8x256xbf16>, vector<256x256xbf16>, vector<8x256xf32> -> vector<8x256xf32>
    %12 = arith.index_cast %c1_i32 : i32 to index
    %c0_7 = arith.constant 0 : index
    %c0_8 = arith.constant 0 : index
    %13 = vector.load %arg1[%12, %c0_7, %c0_8] : memref<8x8x256xf32, #tpu.memory_space<vmem>>, vector<1x8x256xf32>
    %14 = vector.shape_cast %13 : vector<1x8x256xf32> to vector<8x256xf32>
    %15 = arith.addf %14, %11 : vector<8x256xf32>
    %16 = math.tanh %15 : vector<8x256xf32>
    %c2_i32 = arith.constant 2 : i32
    %17 = arith.truncf %16 : vector<8x256xf32> to vector<8x256xbf16>
    %c0_9 = arith.constant 0 : index
    %c0_10 = arith.constant 0 : index
    %18 = vector.load %arg2[%c0_9, %c0_10] : memref<256x256xbf16, #tpu.memory_space<vmem>>, vector<256x256xbf16>
    %cst_11 = arith.constant dense<0.000000e+00> : vector<8x256xf32>
    %19 = tpu.matmul %17, %18, %cst_11 {dimension_numbers = #tpu.dot_dimension_numbers<[1], [0], [0], [1], [0, 0, 1, 1], [], []>} : vector<8x256xbf16>, vector<256x256xbf16>, vector<8x256xf32> -> vector<8x256xf32>
    %20 = arith.index_cast %c2_i32 : i32 to index
    %c0_12 = arith.constant 0 : index
    %c0_13 = arith.constant 0 : index
    %21 = vector.load %arg1[%20, %c0_12, %c0_13] : memref<8x8x256xf32, #tpu.memory_space<vmem>>, vector<1x8x256xf32>
    %22 = vector.shape_cast %21 : vector<1x8x256xf32> to vector<8x256xf32>
    %23 = arith.addf %22, %19 : vector<8x256xf32>
    %24 = math.tanh %23 : vector<8x256xf32>
    %c3_i32 = arith.constant 3 : i32
    %25 = arith.truncf %24 : vector<8x256xf32> to vector<8x256xbf16>
    %c0_14 = arith.constant 0 : index
    %c0_15 = arith.constant 0 : index
    %26 = vector.load %arg2[%c0_14, %c0_15] : memref<256x256xbf16, #tpu.memory_space<vmem>>, vector<256x256xbf16>
    %cst_16 = arith.constant dense<0.000000e+00> : vector<8x256xf32>
    %27 = tpu.matmul %25, %26, %cst_16 {dimension_numbers = #tpu.dot_dimension_numbers<[1], [0], [0], [1], [0, 0, 1, 1], [], []>} : vector<8x256xbf16>, vector<256x256xbf16>, vector<8x256xf32> -> vector<8x256xf32>
    %28 = arith.index_cast %c3_i32 : i32 to index
    %c0_17 = arith.constant 0 : index
    %c0_18 = arith.constant 0 : index
    %29 = vector.load %arg1[%28, %c0_17, %c0_18] : memref<8x8x256xf32, #tpu.memory_space<vmem>>, vector<1x8x256xf32>
    %30 = vector.shape_cast %29 : vector<1x8x256xf32> to vector<8x256xf32>
    %31 = arith.addf %30, %27 : vector<8x256xf32>
    %32 = math.tanh %31 : vector<8x256xf32>
    %c4_i32 = arith.constant 4 : i32
    %33 = arith.truncf %32 : vector<8x256xf32> to vector<8x256xbf16>
    %c0_19 = arith.constant 0 : index
    %c0_20 = arith.constant 0 : index
    %34 = vector.load %arg2[%c0_19, %c0_20] : memref<256x256xbf16, #tpu.memory_space<vmem>>, vector<256x256xbf16>
    %cst_21 = arith.constant dense<0.000000e+00> : vector<8x256xf32>
    %35 = tpu.matmul %33, %34, %cst_21 {dimension_numbers = #tpu.dot_dimension_numbers<[1], [0], [0], [1], [0, 0, 1, 1], [], []>} : vector<8x256xbf16>, vector<256x256xbf16>, vector<8x256xf32> -> vector<8x256xf32>
    %36 = arith.index_cast %c4_i32 : i32 to index
    %c0_22 = arith.constant 0 : index
    %c0_23 = arith.constant 0 : index
    %37 = vector.load %arg1[%36, %c0_22, %c0_23] : memref<8x8x256xf32, #tpu.memory_space<vmem>>, vector<1x8x256xf32>
    %38 = vector.shape_cast %37 : vector<1x8x256xf32> to vector<8x256xf32>
    %39 = arith.addf %38, %35 : vector<8x256xf32>
    %40 = math.tanh %39 : vector<8x256xf32>
    %c5_i32 = arith.constant 5 : i32
    %41 = arith.truncf %40 : vector<8x256xf32> to vector<8x256xbf16>
    %c0_24 = arith.constant 0 : index
    %c0_25 = arith.constant 0 : index
    %42 = vector.load %arg2[%c0_24, %c0_25] : memref<256x256xbf16, #tpu.memory_space<vmem>>, vector<256x256xbf16>
    %cst_26 = arith.constant dense<0.000000e+00> : vector<8x256xf32>
    %43 = tpu.matmul %41, %42, %cst_26 {dimension_numbers = #tpu.dot_dimension_numbers<[1], [0], [0], [1], [0, 0, 1, 1], [], []>} : vector<8x256xbf16>, vector<256x256xbf16>, vector<8x256xf32> -> vector<8x256xf32>
    %44 = arith.index_cast %c5_i32 : i32 to index
    %c0_27 = arith.constant 0 : index
    %c0_28 = arith.constant 0 : index
    %45 = vector.load %arg1[%44, %c0_27, %c0_28] : memref<8x8x256xf32, #tpu.memory_space<vmem>>, vector<1x8x256xf32>
    %46 = vector.shape_cast %45 : vector<1x8x256xf32> to vector<8x256xf32>
    %47 = arith.addf %46, %43 : vector<8x256xf32>
    %48 = math.tanh %47 : vector<8x256xf32>
    %c6_i32 = arith.constant 6 : i32
    %49 = arith.truncf %48 : vector<8x256xf32> to vector<8x256xbf16>
    %c0_29 = arith.constant 0 : index
    %c0_30 = arith.constant 0 : index
    %50 = vector.load %arg2[%c0_29, %c0_30] : memref<256x256xbf16, #tpu.memory_space<vmem>>, vector<256x256xbf16>
    %cst_31 = arith.constant dense<0.000000e+00> : vector<8x256xf32>
    %51 = tpu.matmul %49, %50, %cst_31 {dimension_numbers = #tpu.dot_dimension_numbers<[1], [0], [0], [1], [0, 0, 1, 1], [], []>} : vector<8x256xbf16>, vector<256x256xbf16>, vector<8x256xf32> -> vector<8x256xf32>
    %52 = arith.index_cast %c6_i32 : i32 to index
    %c0_32 = arith.constant 0 : index
    %c0_33 = arith.constant 0 : index
    %53 = vector.load %arg1[%52, %c0_32, %c0_33] : memref<8x8x256xf32, #tpu.memory_space<vmem>>, vector<1x8x256xf32>
    %54 = vector.shape_cast %53 : vector<1x8x256xf32> to vector<8x256xf32>
    %55 = arith.addf %54, %51 : vector<8x256xf32>
    %56 = math.tanh %55 : vector<8x256xf32>
    %c7_i32 = arith.constant 7 : i32
    %57 = arith.truncf %56 : vector<8x256xf32> to vector<8x256xbf16>
    %c0_34 = arith.constant 0 : index
    %c0_35 = arith.constant 0 : index
    %58 = vector.load %arg2[%c0_34, %c0_35] : memref<256x256xbf16, #tpu.memory_space<vmem>>, vector<256x256xbf16>
    %cst_36 = arith.constant dense<0.000000e+00> : vector<8x256xf32>
    %59 = tpu.matmul %57, %58, %cst_36 {dimension_numbers = #tpu.dot_dimension_numbers<[1], [0], [0], [1], [0, 0, 1, 1], [], []>} : vector<8x256xbf16>, vector<256x256xbf16>, vector<8x256xf32> -> vector<8x256xf32>
    %60 = arith.index_cast %c7_i32 : i32 to index
    %c0_37 = arith.constant 0 : index
    %c0_38 = arith.constant 0 : index
    %61 = vector.load %arg1[%60, %c0_37, %c0_38] : memref<8x8x256xf32, #tpu.memory_space<vmem>>, vector<1x8x256xf32>
    %62 = vector.shape_cast %61 : vector<1x8x256xf32> to vector<8x256xf32>
    %63 = arith.addf %62, %59 : vector<8x256xf32>
    %64 = math.tanh %63 : vector<8x256xf32>
    %c8_i32 = arith.constant 8 : i32
    %65 = arith.truncf %64 : vector<8x256xf32> to vector<8x256xbf16>
    %c0_39 = arith.constant 0 : index
    %c0_40 = arith.constant 0 : index
    %66 = vector.load %arg3[%c0_39, %c0_40] : memref<256x128xbf16, #tpu.memory_space<vmem>>, vector<256x128xbf16>
    %cst_41 = arith.constant dense<0.000000e+00> : vector<8x128xf32>
    %67 = tpu.matmul %65, %66, %cst_41 {dimension_numbers = #tpu.dot_dimension_numbers<[1], [0], [0], [1], [0, 0, 1, 1], [], []>} : vector<8x256xbf16>, vector<256x128xbf16>, vector<8x128xf32> -> vector<8x128xf32>
    %c0_42 = arith.constant 0 : index
    %c0_43 = arith.constant 0 : index
    %68 = vector.load %arg4[%c0_42, %c0_43] : memref<1x128xf32, #tpu.memory_space<vmem>>, vector<1x128xf32>
    %69 = vector.broadcast %68 : vector<1x128xf32> to vector<8x128xf32>
    %70 = arith.addf %67, %69 : vector<8x128xf32>
    %71 = arith.negf %70 : vector<8x128xf32>
    %72 = math.exp %71 : vector<8x128xf32>
    %cst_44 = arith.constant 1.000000e+00 : f32
    %73 = vector.broadcast %cst_44 : f32 to vector<8x128xf32>
    %74 = arith.addf %73, %72 : vector<8x128xf32>
    %75 = arith.divf %73, %74 : vector<8x128xf32>
    %c0_45 = arith.constant 0 : index
    %c0_46 = arith.constant 0 : index
    %76 = vector.load %arg5[%c0_45, %c0_46] : memref<8x128xf32, #tpu.memory_space<vmem>>, vector<8x128xf32>
    tpu.vector_store %arg5[%c0_45, %c0_46], %75 {strides = array<i32>} : memref<8x128xf32, #tpu.memory_space<vmem>>, vector<8x128xf32>,
    return
  }
  func.func @transform_0(%arg0: i32) -> (i32, i32, i32) {
    %c0_i32 = arith.constant 0 : i32
    %c0_i32_0 = arith.constant 0 : i32
    %c0_i32_1 = arith.constant 0 : i32
    return %c0_i32, %arg0, %c0_i32_0 : i32, i32, i32
  }
  func.func @transform_1(%arg0: i32) -> (i32, i32) {
    %c0_i32 = arith.constant 0 : i32
    %c0_i32_0 = arith.constant 0 : i32
    %c0_i32_1 = arith.constant 0 : i32
    return %c0_i32, %c0_i32_0 : i32, i32
  }
  func.func @transform_2(%arg0: i32) -> (i32, i32) {
    %c0_i32 = arith.constant 0 : i32
    %c0_i32_0 = arith.constant 0 : i32
    %c0_i32_1 = arith.constant 0 : i32
    return %c0_i32, %c0_i32_0 : i32, i32
  }
  func.func @transform_3(%arg0: i32) -> (i32, i32) {
    %c0_i32 = arith.constant 0 : i32
    %c0_i32_0 = arith.constant 0 : i32
    %c0_i32_1 = arith.constant 0 : i32
    return %c0_i32, %c0_i32_0 : i32, i32
  }
  func.func @transform_4(%arg0: i32) -> (i32, i32) {
    %c0_i32 = arith.constant 0 : i32
    %c0_i32_0 = arith.constant 0 : i32
    return %arg0, %c0_i32 : i32, i32
  }
}

</mosaic_0001>

<llo_original>
// kernel: tpu_custom_call.1
$region0: #{tpu_custom_call.1}
  #allocation0 [shape = 'u32[]', space=smem, size = 0x4, offset = 0x4, fixed_abs, tag = 'smem constant byte address 0x4 - core index']
  #allocation1 [shape = 'u32[72,128]{1,0:T(1,128)}', space=vmem, size = 0x9000, scoped, tag = 'internal scratch']
  %s0 = inlined_call_operand.hbm [shape: f32[8,8,256], index: 0, kind: input, shape index: {}]
  %s1 = inlined_call_operand.hbm [shape: bf16[256,256], index: 1, kind: input, shape index: {}]
  %s2 = inlined_call_operand.hbm [shape: bf16[256,128], index: 2, kind: input, shape index: {}]
  %s3 = inlined_call_operand.vmem [shape: f32[1,128], index: 3, kind: input, shape index: {}]
  %s4 = inlined_call_operand.hbm [shape: f32[8,128], index: 4, kind: output, shape index: {}]
  %s5 = sld [smem:[#allocation0]]
  $region38: #{tpu_custom_call.1} parent=0
    _
  %s7 = ssub.s32 1, %s5
  %s8 = scalar_select 0, %s7, %s5
  $region1: #{tpu_custom_call.1} parent=0
    #allocation2 [shape = 'u8[65536]{0}', space=vmem, size = 0x10000, scoped, tag = 'input window, operand 0, single buffered']
    #allocation3 [shape = 's32[1]{0}', space=sflag, size = 0x4, scoped, tag = 'scoped memory for tpu_custom_call.1']
    #allocation4 [shape = 's32[1]{0}', space=sflag, size = 0x4, scoped, tag = 'scoped memory for tpu_custom_call.1']
    #allocation5 [shape = 'u8[131072]{0}', space=vmem, size = 0x20000, scoped, tag = 'input window, operand 1, single buffered']
    #allocation6 [shape = 's32[1]{0}', space=sflag, size = 0x4, scoped, tag = 'scoped memory for tpu_custom_call.1']
    #allocation7 [shape = 'u8[65536]{0}', space=vmem, size = 0x10000, scoped, tag = 'input window, operand 2, single buffered']
    #allocation8 [shape = 'u8[4096]{0}', space=vmem, size = 0x1000, scoped, tag = 'output window, operand 0, single buffered']
    %9 = vsyncpa [#allocation3], 0
    %10 = vsyncpa [#allocation6], 0
    %11 = vsyncpa [#allocation4], 0
    // Predicated region
    $region2: #{tpu_custom_call.1} parent=1 // pred_check
      _
    $region3: #{tpu_custom_call.1} parent=1 // pred_check_branch
      %13 = sbr.rel (0) target = $region5
    $region4: #{tpu_custom_call.1} parent=1 // pred_region
      %15 = vsyncadd [#allocation3], 0
      %s16 = sshll.u32 %s0, 4
      %s17 = int_to_ptr.hbm [resolvable:$true] %s16
      %s18 = sshll.u32 [#allocation2], 4
      %s19 = int_to_ptr.vmem [resolvable:$true] %s18
      %24 = dma.hbm_to_vmem [thread:$0]  %s17, 2048, %s19, [#allocation3], 256, 256, 16
    $region5: #{tpu_custom_call.1} parent=1 // pred_fallthru
      _
    // Predicated region
    $region6: #{tpu_custom_call.1} parent=1 // pred_check
      _
    $region7: #{tpu_custom_call.1} parent=1 // pred_check_branch
      %26 = sbr.rel (0) target = $region9
    $region8: #{tpu_custom_call.1} parent=1 // pred_region
      %28 = vsyncadd [#allocation6], 0
      %s29 = sshll.u32 %s1, 4
      %s30 = int_to_ptr.hbm [resolvable:$true] %s29
      %s31 = sshll.u32 [#allocation5], 4
      %s32 = int_to_ptr.vmem [resolvable:$true] %s31
      %37 = dma.hbm_to_vmem [thread:$0]  %s30, 4096, %s32, [#allocation6], 128, 128, 8
    $region9: #{tpu_custom_call.1} parent=1 // pred_fallthru
      _
    // Predicated region
    $region10: #{tpu_custom_call.1} parent=1 // pred_check
      _
    $region11: #{tpu_custom_call.1} parent=1 // pred_check_branch
      %39 = sbr.rel (0) target = $region13
    $region12: #{tpu_custom_call.1} parent=1 // pred_region
      %41 = vsyncadd [#allocation6], 0
      %s42 = sshll.u32 %s2, 4
      %s43 = int_to_ptr.hbm [resolvable:$true] %s42
      %s44 = sshll.u32 [#allocation7], 4
      %s45 = int_to_ptr.vmem [resolvable:$true] %s44
      %50 = dma.hbm_to_vmem [thread:$0]  %s43, 2048, %s45, [#allocation6], 64, 64, 4
    $region13: #{tpu_custom_call.1} parent=1 // pred_fallthru
      _
    // Predicated region
    $region14: #{tpu_custom_call.1} parent=1 // pred_check
      _
    $region15: #{tpu_custom_call.1} parent=1 // pred_check_branch
      %52 = sbr.rel (0) target = $region17
    $region16: #{tpu_custom_call.1} parent=1 // pred_region
      _
    $region17: #{tpu_custom_call.1} parent=1 // pred_fallthru
      _
    // Predicated region
    $region18: #{tpu_custom_call.1} parent=1 // pred_check
      _
    $region19: #{tpu_custom_call.1} parent=1 // pred_check_branch
      %54 = sbr.rel (0) target = $region21
    $region20: #{tpu_custom_call.1} parent=1 // pred_region
      %56 = dma.done [#allocation3], 2048
    $region21: #{tpu_custom_call.1} parent=1 // pred_fallthru
      _
    // Predicated region
    $region22: #{tpu_custom_call.1} parent=1 // pred_check
      _
    $region23: #{tpu_custom_call.1} parent=1 // pred_check_branch
      %58 = sbr.rel (0) target = $region25
    $region24: #{tpu_custom_call.1} parent=1 // pred_region
      %60 = dma.done [#allocation6], 4096
    $region25: #{tpu_custom_call.1} parent=1 // pred_fallthru
      _
    // Predicated region
    $region26: #{tpu_custom_call.1} parent=1 // pred_check
      _
    $region27: #{tpu_custom_call.1} parent=1 // pred_check_branch
      %62 = sbr.rel (0) target = $region29
    $region28: #{tpu_custom_call.1} parent=1 // pred_region
      %64 = dma.done [#allocation6], 2048
    $region29: #{tpu_custom_call.1} parent=1 // pred_fallthru
      _
    %v66 = vld [vmem:[#allocation5] sm:$0xff]
    %v67 = vld [vmem:[#allocation5 + $0x8] sm:$0xff]
    %v68 = vld [vmem:[#allocation5 + $0x10] sm:$0xff]
    %v69 = vld [vmem:[#allocation5 + $0x18] sm:$0xff]
    %v70 = vld [vmem:[#allocation5 + $0x20] sm:$0xff]
    %v71 = vld [vmem:[#allocation5 + $0x28] sm:$0xff]
    %v72 = vld [vmem:[#allocation5 + $0x30] sm:$0xff]
    %v73 = vld [vmem:[#allocation5 + $0x38] sm:$0xff]
    %v74 = vld [vmem:[#allocation5 + $0x40] sm:$0xff]
    %v75 = vld [vmem:[#allocation5 + $0x48] sm:$0xff]
    %v76 = vld [vmem:[#allocation5 + $0x50] sm:$0xff]
    %v77 = vld [vmem:[#allocation5 + $0x58] sm:$0xff]
    %v78 = vld [vmem:[#allocation5 + $0x60] sm:$0xff]
    %v79 = vld [vmem:[#allocation5 + $0x68] sm:$0xff]
    %v80 = vld [vmem:[#allocation5 + $0x70] sm:$0xff]
    %v81 = vld [vmem:[#allocation5 + $0x78] sm:$0xff]
    %v82 = vld [vmem:[#allocation5 + $0x80] sm:$0xff]
    %v83 = vld [vmem:[#allocation5 + $0x88] sm:$0xff]
    %v84 = vld [vmem:[#allocation5 + $0x90] sm:$0xff]
    %v85 = vld [vmem:[#allocation5 + $0x98] sm:$0xff]
    %v86 = vld [vmem:[#allocation5 + $0xa0] sm:$0xff]
    %v87 = vld [vmem:[#allocation5 + $0xa8] sm:$0xff]
    %v88 = vld [vmem:[#allocation5 + $0xb0] sm:$0xff]
    %v89 = vld [vmem:[#allocation5 + $0xb8] sm:$0xff]
    %v90 = vld [vmem:[#allocation5 + $0xc0] sm:$0xff]
    %v91 = vld [vmem:[#allocation5 + $0xc8] sm:$0xff]
    %v92 = vld [vmem:[#allocation5 + $0xd0] sm:$0xff]
    %v93 = vld [vmem:[#allocation5 + $0xd8] sm:$0xff]
    %v94 = vld [vmem:[#allocation5 + $0xe0] sm:$0xff]
    %v95 = vld [vmem:[#allocation5 + $0xe8] sm:$0xff]
    %v96 = vld [vmem:[#allocation5 + $0xf0] sm:$0xff]
    %v97 = vld [vmem:[#allocation5 + $0xf8] sm:$0xff]
    %v130 = vunpack.c.l.b16 %v66
    %v131 = vunpack.c.h.b16 %v66
    %v132 = vunpack.c.l.b16 %v67
    %v133 = vunpack.c.h.b16 %v67
    %v134 = vunpack.c.l.b16 %v68
    %v135 = vunpack.c.h.b16 %v68
    %v136 = vunpack.c.l.b16 %v69
    %v137 = vunpack.c.h.b16 %v69
    %v138 = vunpack.c.l.b16 %v70
    %v139 = vunpack.c.h.b16 %v70
    %v140 = vunpack.c.l.b16 %v71
    %v141 = vunpack.c.h.b16 %v71
    %v142 = vunpack.c.l.b16 %v72
    %v143 = vunpack.c.h.b16 %v72
    %v144 = vunpack.c.l.b16 %v73
    %v145 = vunpack.c.h.b16 %v73
    %v146 = vunpack.c.l.b16 %v74
    %v147 = vunpack.c.h.b16 %v74
    %v148 = vunpack.c.l.b16 %v75
    %v149 = vunpack.c.h.b16 %v75
    %v150 = vunpack.c.l.b16 %v76
    %v151 = vunpack.c.h.b16 %v76
    %v152 = vunpack.c.l.b16 %v77
    %v153 = vunpack.c.h.b16 %v77
    %v154 = vunpack.c.l.b16 %v78
    %v155 = vunpack.c.h.b16 %v78
    %v156 = vunpack.c.l.b16 %v79
    %v157 = vunpack.c.h.b16 %v79
    %v158 = vunpack.c.l.b16 %v80
    %v159 = vunpack.c.h.b16 %v80
    %v160 = vunpack.c.l.b16 %v81
    %v161 = vunpack.c.h.b16 %v81
    %v162 = vunpack.c.l.b16 %v82
    %v163 = vunpack.c.h.b16 %v82
    %v164 = vunpack.c.l.b16 %v83
    %v165 = vunpack.c.h.b16 %v83
    %v166 = vunpack.c.l.b16 %v84
    %v167 = vunpack.c.h.b16 %v84
    %v168 = vunpack.c.l.b16 %v85
    %v169 = vunpack.c.h.b16 %v85
    %v170 = vunpack.c.l.b16 %v86
    %v171 = vunpack.c.h.b16 %v86
    %v172 = vunpack.c.l.b16 %v87
    %v173 = vunpack.c.h.b16 %v87
    %v174 = vunpack.c.l.b16 %v88
    %v175 = vunpack.c.h.b16 %v88
    %v176 = vunpack.c.l.b16 %v89
    %v177 = vunpack.c.h.b16 %v89
    %v178 = vunpack.c.l.b16 %v90
    %v179 = vunpack.c.h.b16 %v90
    %v180 = vunpack.c.l.b16 %v91
    %v181 = vunpack.c.h.b16 %v91
    %v182 = vunpack.c.l.b16 %v92
    %v183 = vunpack.c.h.b16 %v92
    %v184 = vunpack.c.l.b16 %v93
    %v185 = vunpack.c.h.b16 %v93
    %v186 = vunpack.c.l.b16 %v94
    %v187 = vunpack.c.h.b16 %v94
    %v188 = vunpack.c.l.b16 %v95
    %v189 = vunpack.c.h.b16 %v95
    %v190 = vunpack.c.l.b16 %v96
    %v191 = vunpack.c.h.b16 %v96
    %v192 = vunpack.c.l.b16 %v97
    %v193 = vunpack.c.h.b16 %v97
    %v194 = vpack.c.b16 %v132, %v130
    %v195 = vpack.c.b16 %v133, %v131
    %v196 = vpack.c.b16 %v136, %v134
    %v197 = vpack.c.b16 %v137, %v135
    %v198 = vpack.c.b16 %v140, %v138
    %v199 = vpack.c.b16 %v141, %v139
    %v200 = vpack.c.b16 %v144, %v142
    %v201 = vpack.c.b16 %v145, %v143
    %v202 = vpack.c.b16 %v148, %v146
    %v203 = vpack.c.b16 %v149, %v147
    %v204 = vpack.c.b16 %v152, %v150
    %v205 = vpack.c.b16 %v153, %v151
    %v206 = vpack.c.b16 %v156, %v154
    %v207 = vpack.c.b16 %v157, %v155
    %v208 = vpack.c.b16 %v160, %v158
    %v209 = vpack.c.b16 %v161, %v159
    %v210 = vpack.c.b16 %v164, %v162
    %v211 = vpack.c.b16 %v165, %v163
    %v212 = vpack.c.b16 %v168, %v166
    %v213 = vpack.c.b16 %v169, %v167
    %v214 = vpack.c.b16 %v172, %v170
    %v215 = vpack.c.b16 %v173, %v171
    %v216 = vpack.c.b16 %v176, %v174
    %v217 = vpack.c.b16 %v177, %v175
    %v218 = vpack.c.b16 %v180, %v178
    %v219 = vpack.c.b16 %v181, %v179
    %v220 = vpack.c.b16 %v184, %v182
    %v221 = vpack.c.b16 %v185, %v183
    %v222 = vpack.c.b16 %v188, %v186
    %v223 = vpack.c.b16 %v189, %v187
    %v224 = vpack.c.b16 %v192, %v190
    %v225 = vpack.c.b16 %v193, %v191
    %258 = vmatpush.bf16.msra.mxu0 %v208
    %259 = vmatpush.bf16.msra.mxu0 %v206
    %260 = vmatpush.bf16.msra.mxu0 %v204
    %261 = vmatpush.bf16.msra.mxu0 %v202
    %262 = vmatpush.bf16.msra.mxu0 %v200
    %263 = vmatpush.bf16.msra.mxu0 %v198
    %264 = vmatpush.bf16.msra.mxu0 %v196
    %265 = vmatpush.bf16.msra.mxu0 %v194
    %266 = vmatmul.bf16.gmra.mxu0 0
    %v267 = vpop.f32.mrf.mxu0
    %v268 = vadd.f32 0.0, %v267
    %v269 = vpop.f32.mrf.mxu0
    %270 = vdwg.mxu0
    %271 = vmatpush.bf16.msra.mxu0 %v224
    %272 = vmatpush.bf16.msra.mxu0 %v222
    %273 = vmatpush.bf16.msra.mxu0 %v220
    %274 = vmatpush.bf16.msra.mxu0 %v218
    %275 = vmatpush.bf16.msra.mxu0 %v216
    %276 = vmatpush.bf16.msra.mxu0 %v214
    %277 = vmatpush.bf16.msra.mxu0 %v212
    %278 = vmatpush.bf16.msra.mxu0 %v210
    %279 = vmatmul.bf16.gmra.mxu0 0
    %v280 = vpop.f32.mrf.mxu0
    %v281 = vadd.f32 %v268, %v280
    %v282 = vpop.f32.mrf.mxu0
    %283 = vdwg.mxu0
    %284 = vmatpush.bf16.msra.mxu0 %v209
    %285 = vmatpush.bf16.msra.mxu0 %v207
    %286 = vmatpush.bf16.msra.mxu0 %v205
    %287 = vmatpush.bf16.msra.mxu0 %v203
    %288 = vmatpush.bf16.msra.mxu0 %v201
    %289 = vmatpush.bf16.msra.mxu0 %v199
    %290 = vmatpush.bf16.msra.mxu0 %v197
    %291 = vmatpush.bf16.msra.mxu0 %v195
    %292 = vmatmul.bf16.gmra.mxu0 0
    %v293 = vpop.f32.mrf.mxu0
    %v294 = vadd.f32 0.0, %v293
    %v295 = vpop.f32.mrf.mxu0
    %296 = vdwg.mxu0
    %297 = vmatpush.bf16.msra.mxu0 %v225
    %298 = vmatpush.bf16.msra.mxu0 %v223
    %299 = vmatpush.bf16.msra.mxu0 %v221
    %300 = vmatpush.bf16.msra.mxu0 %v219
    %301 = vmatpush.bf16.msra.mxu0 %v217
    %302 = vmatpush.bf16.msra.mxu0 %v215
    %303 = vmatpush.bf16.msra.mxu0 %v213
    %304 = vmatpush.bf16.msra.mxu0 %v211
    %305 = vmatmul.bf16.gmra.mxu0 0
    %v306 = vpop.f32.mrf.mxu0
    %v307 = vadd.f32 %v294, %v306
    %v308 = vpop.f32.mrf.mxu0
    %309 = vdwg.mxu0
    %v310 = vld [vmem:[#allocation2] sm:$0xff]
    %v311 = vld [vmem:[#allocation2 + $0x8] sm:$0xff]
    %v312 = vadd.f32 %v310, %v281
    %v313 = vadd.f32 %v311, %v307
    %v314 = vtanh.pop %v312
    %v315 = vtanh.pop %v313
    %v316 = vpack.c.bf16 %v314, %v314
    %v317 = vpack.c.bf16 %v315, %v315
    %318 = vmatpush.bf16.msra.mxu0 %v208
    %319 = vmatpush.bf16.msra.mxu0 %v206
    %320 = vmatpush.bf16.msra.mxu0 %v204
    %321 = vmatpush.bf16.msra.mxu0 %v202
    %322 = vmatpush.bf16.msra.mxu0 %v200
    %323 = vmatpush.bf16.msra.mxu0 %v198
    %324 = vmatpush.bf16.msra.mxu0 %v196
    %325 = vmatpush.bf16.msra.mxu0 %v194
    %326 = vmatmul.bf16.gmra.mxu0 %v316
    %v327 = vpop.f32.mrf.mxu0
    %v328 = vadd.f32 0.0, %v327
    %v329 = vpop.f32.mrf.mxu0
    %330 = vdwg.mxu0
    %331 = vmatpush.bf16.msra.mxu0 %v224
    %332 = vmatpush.bf16.msra.mxu0 %v222
    %333 = vmatpush.bf16.msra.mxu0 %v220
    %334 = vmatpush.bf16.msra.mxu0 %v218
    %335 = vmatpush.bf16.msra.mxu0 %v216
    %336 = vmatpush.bf16.msra.mxu0 %v214
    %337 = vmatpush.bf16.msra.mxu0 %v212
    %338 = vmatpush.bf16.msra.mxu0 %v210
    %339 = vmatmul.bf16.gmra.mxu0 %v317
    %v340 = vpop.f32.mrf.mxu0
    %v341 = vadd.f32 %v328, %v340
    %v342 = vpop.f32.mrf.mxu0
    %343 = vdwg.mxu0
    %344 = vmatpush.bf16.msra.mxu0 %v209
    %345 = vmatpush.bf16.msra.mxu0 %v207
    %346 = vmatpush.bf16.msra.mxu0 %v205
    %347 = vmatpush.bf16.msra.mxu0 %v203
    %348 = vmatpush.bf16.msra.mxu0 %v201
    %349 = vmatpush.bf16.msra.mxu0 %v199
    %350 = vmatpush.bf16.msra.mxu0 %v197
    %351 = vmatpush.bf16.msra.mxu0 %v195
    %352 = vmatmul.bf16.gmra.mxu0 %v316
    %v353 = vpop.f32.mrf.mxu0
    %v354 = vadd.f32 0.0, %v353
    %v355 = vpop.f32.mrf.mxu0
    %356 = vdwg.mxu0
    %357 = vmatpush.bf16.msra.mxu0 %v225
    %358 = vmatpush.bf16.msra.mxu0 %v223
    %359 = vmatpush.bf16.msra.mxu0 %v221
    %360 = vmatpush.bf16.msra.mxu0 %v219
    %361 = vmatpush.bf16.msra.mxu0 %v217
    %362 = vmatpush.bf16.msra.mxu0 %v215
    %363 = vmatpush.bf16.msra.mxu0 %v213
    %364 = vmatpush.bf16.msra.mxu0 %v211
    %365 = vmatmul.bf16.gmra.mxu0 %v317
    %v366 = vpop.f32.mrf.mxu0
    %v367 = vadd.f32 %v354, %v366
    %v368 = vpop.f32.mrf.mxu0
    %369 = vdwg.mxu0
    %s370 = scalar_lea.vmem [#allocation2], 16
    %v371 = vld [vmem:[%s370] sm:$0xff]
    %v372 = vld [vmem:[%s370 + $0x8] sm:$0xff]
    %v373 = vadd.f32 %v371, %v341
    %v374 = vadd.f32 %v372, %v367
    %v375 = vtanh.pop %v373
    %v376 = vtanh.pop %v374
    %v377 = vpack.c.bf16 %v375, %v375
    %v378 = vpack.c.bf16 %v376, %v376
    %379 = vmatpush.bf16.msra.mxu0 %v208
    %380 = vmatpush.bf16.msra.mxu0 %v206
    %381 = vmatpush.bf16.msra.mxu0 %v204
    %382 = vmatpush.bf16.msra.mxu0 %v202
    %383 = vmatpush.bf16.msra.mxu0 %v200
    %384 = vmatpush.bf16.msra.mxu0 %v198
    %385 = vmatpush.bf16.msra.mxu0 %v196
    %386 = vmatpush.bf16.msra.mxu0 %v194
    %387 = vmatmul.bf16.gmra.mxu0 %v377
    %v388 = vpop.f32.mrf.mxu0
    %v389 = vadd.f32 0.0, %v388
    %v390 = vpop.f32.mrf.mxu0
    %391 = vdwg.mxu0
    %392 = vmatpush.bf16.msra.mxu0 %v224
    %393 = vmatpush.bf16.msra.mxu0 %v222
    %394 = vmatpush.bf16.msra.mxu0 %v220
    %395 = vmatpush.bf16.msra.mxu0 %v218
    %396 = vmatpush.bf16.msra.mxu0 %v216
    %397 = vmatpush.bf16.msra.mxu0 %v214
    %398 = vmatpush.bf16.msra.mxu0 %v212
    %399 = vmatpush.bf16.msra.mxu0 %v210
    %400 = vmatmul.bf16.gmra.mxu0 %v378
    %v401 = vpop.f32.mrf.mxu0
    %v402 = vadd.f32 %v389, %v401
    %v403 = vpop.f32.mrf.mxu0
    %404 = vdwg.mxu0
    %405 = vmatpush.bf16.msra.mxu0 %v209
    %406 = vmatpush.bf16.msra.mxu0 %v207
    %407 = vmatpush.bf16.msra.mxu0 %v205
    %408 = vmatpush.bf16.msra.mxu0 %v203
    %409 = vmatpush.bf16.msra.mxu0 %v201
    %410 = vmatpush.bf16.msra.mxu0 %v199
    %411 = vmatpush.bf16.msra.mxu0 %v197
    %412 = vmatpush.bf16.msra.mxu0 %v195
    %413 = vmatmul.bf16.gmra.mxu0 %v377
    %v414 = vpop.f32.mrf.mxu0
    %v415 = vadd.f32 0.0, %v414
    %v416 = vpop.f32.mrf.mxu0
    %417 = vdwg.mxu0
    %418 = vmatpush.bf16.msra.mxu0 %v225
    %419 = vmatpush.bf16.msra.mxu0 %v223
    %420 = vmatpush.bf16.msra.mxu0 %v221
    %421 = vmatpush.bf16.msra.mxu0 %v219
    %422 = vmatpush.bf16.msra.mxu0 %v217
    %423 = vmatpush.bf16.msra.mxu0 %v215
    %424 = vmatpush.bf16.msra.mxu0 %v213
    %425 = vmatpush.bf16.msra.mxu0 %v211
    %426 = vmatmul.bf16.gmra.mxu0 %v378
    %v427 = vpop.f32.mrf.mxu0
    %v428 = vadd.f32 %v415, %v427
    %v429 = vpop.f32.mrf.mxu0
    %430 = vdwg.mxu0
    %s431 = scalar_lea.vmem [#allocation2], 32
    %v432 = vld [vmem:[%s431] sm:$0xff]
    %v433 = vld [vmem:[%s431 + $0x8] sm:$0xff]
    %v434 = vadd.f32 %v432, %v402
    %v435 = vadd.f32 %v433, %v428
    %v436 = vtanh.pop %v434
    %v437 = vtanh.pop %v435
    %v438 = vpack.c.bf16 %v436, %v436
    %v439 = vpack.c.bf16 %v437, %v437
    %440 = vmatpush.bf16.msra.mxu0 %v208
    %441 = vmatpush.bf16.msra.mxu0 %v206
    %442 = vmatpush.bf16.msra.mxu0 %v204
    %443 = vmatpush.bf16.msra.mxu0 %v202
    %444 = vmatpush.bf16.msra.mxu0 %v200
    %445 = vmatpush.bf16.msra.mxu0 %v198
    %446 = vmatpush.bf16.msra.mxu0 %v196
    %447 = vmatpush.bf16.msra.mxu0 %v194
    %448 = vmatmul.bf16.gmra.mxu0 %v438
    %v449 = vpop.f32.mrf.mxu0
    %v450 = vadd.f32 0.0, %v449
    %v451 = vpop.f32.mrf.mxu0
    %452 = vdwg.mxu0
    %453 = vmatpush.bf16.msra.mxu0 %v224
    %454 = vmatpush.bf16.msra.mxu0 %v222
    %455 = vmatpush.bf16.msra.mxu0 %v220
    %456 = vmatpush.bf16.msra.mxu0 %v218
    %457 = vmatpush.bf16.msra.mxu0 %v216
    %458 = vmatpush.bf16.msra.mxu0 %v214
    %459 = vmatpush.bf16.msra.mxu0 %v212
    %460 = vmatpush.bf16.msra.mxu0 %v210
    %461 = vmatmul.bf16.gmra.mxu0 %v439
    %v462 = vpop.f32.mrf.mxu0
    %v463 = vadd.f32 %v450, %v462
    %v464 = vpop.f32.mrf.mxu0
    %465 = vdwg.mxu0
    %466 = vmatpush.bf16.msra.mxu0 %v209
    %467 = vmatpush.bf16.msra.mxu0 %v207
    %468 = vmatpush.bf16.msra.mxu0 %v205
    %469 = vmatpush.bf16.msra.mxu0 %v203
    %470 = vmatpush.bf16.msra.mxu0 %v201
    %471 = vmatpush.bf16.msra.mxu0 %v199
    %472 = vmatpush.bf16.msra.mxu0 %v197
    %473 = vmatpush.bf16.msra.mxu0 %v195
    %474 = vmatmul.bf16.gmra.mxu0 %v438
    %v475 = vpop.f32.mrf.mxu0
    %v476 = vadd.f32 0.0, %v475
    %v477 = vpop.f32.mrf.mxu0
    %478 = vdwg.mxu0
    %479 = vmatpush.bf16.msra.mxu0 %v225
    %480 = vmatpush.bf16.msra.mxu0 %v223
    %481 = vmatpush.bf16.msra.mxu0 %v221
    %482 = vmatpush.bf16.msra.mxu0 %v219
    %483 = vmatpush.bf16.msra.mxu0 %v217
    %484 = vmatpush.bf16.msra.mxu0 %v215
    %485 = vmatpush.bf16.msra.mxu0 %v213
    %486 = vmatpush.bf16.msra.mxu0 %v211
    %487 = vmatmul.bf16.gmra.mxu0 %v439
    %v488 = vpop.f32.mrf.mxu0
    %v489 = vadd.f32 %v476, %v488
    %v490 = vpop.f32.mrf.mxu0
    %491 = vdwg.mxu0
    %s492 = scalar_lea.vmem [#allocation2], 48
    %v493 = vld [vmem:[%s492] sm:$0xff]
    %v494 = vld [vmem:[%s492 + $0x8] sm:$0xff]
    %v495 = vadd.f32 %v493, %v463
    %v496 = vadd.f32 %v494, %v489
    %v497 = vtanh.pop %v495
    %v498 = vtanh.pop %v496
    %v499 = vpack.c.bf16 %v497, %v497
    %v500 = vpack.c.bf16 %v498, %v498
    %501 = vmatpush.bf16.msra.mxu0 %v208
    %502 = vmatpush.bf16.msra.mxu0 %v206
    %503 = vmatpush.bf16.msra.mxu0 %v204
    %504 = vmatpush.bf16.msra.mxu0 %v202
    %505 = vmatpush.bf16.msra.mxu0 %v200
    %506 = vmatpush.bf16.msra.mxu0 %v198
    %507 = vmatpush.bf16.msra.mxu0 %v196
    %508 = vmatpush.bf16.msra.mxu0 %v194
    %509 = vmatmul.bf16.gmra.mxu0 %v499
    %v510 = vpop.f32.mrf.mxu0
    %v511 = vadd.f32 0.0, %v510
    %v512 = vpop.f32.mrf.mxu0
    %513 = vdwg.mxu0
    %514 = vmatpush.bf16.msra.mxu0 %v224
    %515 = vmatpush.bf16.msra.mxu0 %v222
    %516 = vmatpush.bf16.msra.mxu0 %v220
    %517 = vmatpush.bf16.msra.mxu0 %v218
    %518 = vmatpush.bf16.msra.mxu0 %v216
    %519 = vmatpush.bf16.msra.mxu0 %v214
    %520 = vmatpush.bf16.msra.mxu0 %v212
    %521 = vmatpush.bf16.msra.mxu0 %v210
    %522 = vmatmul.bf16.gmra.mxu0 %v500
    %v523 = vpop.f32.mrf.mxu0
    %v524 = vadd.f32 %v511, %v523
    %v525 = vpop.f32.mrf.mxu0
    %526 = vdwg.mxu0
    %527 = vmatpush.bf16.msra.mxu0 %v209
    %528 = vmatpush.bf16.msra.mxu0 %v207
    %529 = vmatpush.bf16.msra.mxu0 %v205
    %530 = vmatpush.bf16.msra.mxu0 %v203
    %531 = vmatpush.bf16.msra.mxu0 %v201
    %532 = vmatpush.bf16.msra.mxu0 %v199
    %533 = vmatpush.bf16.msra.mxu0 %v197
    %534 = vmatpush.bf16.msra.mxu0 %v195
    %535 = vmatmul.bf16.gmra.mxu0 %v499
    %v536 = vpop.f32.mrf.mxu0
    %v537 = vadd.f32 0.0, %v536
    %v538 = vpop.f32.mrf.mxu0
    %539 = vdwg.mxu0
    %540 = vmatpush.bf16.msra.mxu0 %v225
    %541 = vmatpush.bf16.msra.mxu0 %v223
    %542 = vmatpush.bf16.msra.mxu0 %v221
    %543 = vmatpush.bf16.msra.mxu0 %v219
    %544 = vmatpush.bf16.msra.mxu0 %v217
    %545 = vmatpush.bf16.msra.mxu0 %v215
    %546 = vmatpush.bf16.msra.mxu0 %v213
    %547 = vmatpush.bf16.msra.mxu0 %v211
    %548 = vmatmul.bf16.gmra.mxu0 %v500
    %v549 = vpop.f32.mrf.mxu0
    %v550 = vadd.f32 %v537, %v549
    %v551 = vpop.f32.mrf.mxu0
    %552 = vdwg.mxu0
    %s553 = scalar_lea.vmem [#allocation2], 64
    %v554 = vld [vmem:[%s553] sm:$0xff]
    %v555 = vld [vmem:[%s553 + $0x8] sm:$0xff]
    %v556 = vadd.f32 %v554, %v524
    %v557 = vadd.f32 %v555, %v550
    %v558 = vtanh.pop %v556
    %v559 = vtanh.pop %v557
    %v560 = vpack.c.bf16 %v558, %v558
    %v561 = vpack.c.bf16 %v559, %v559
    %562 = vmatpush.bf16.msra.mxu0 %v208
    %563 = vmatpush.bf16.msra.mxu0 %v206
    %564 = vmatpush.bf16.msra.mxu0 %v204
    %565 = vmatpush.bf16.msra.mxu0 %v202
    %566 = vmatpush.bf16.msra.mxu0 %v200
    %567 = vmatpush.bf16.msra.mxu0 %v198
    %568 = vmatpush.bf16.msra.mxu0 %v196
    %569 = vmatpush.bf16.msra.mxu0 %v194
    %570 = vmatmul.bf16.gmra.mxu0 %v560
    %v571 = vpop.f32.mrf.mxu0
    %v572 = vadd.f32 0.0, %v571
    %v573 = vpop.f32.mrf.mxu0
    %574 = vdwg.mxu0
    %575 = vmatpush.bf16.msra.mxu0 %v224
    %576 = vmatpush.bf16.msra.mxu0 %v222
    %577 = vmatpush.bf16.msra.mxu0 %v220
    %578 = vmatpush.bf16.msra.mxu0 %v218
    %579 = vmatpush.bf16.msra.mxu0 %v216
    %580 = vmatpush.bf16.msra.mxu0 %v214
    %581 = vmatpush.bf16.msra.mxu0 %v212
    %582 = vmatpush.bf16.msra.mxu0 %v210
    %583 = vmatmul.bf16.gmra.mxu0 %v561
    %v584 = vpop.f32.mrf.mxu0
    %v585 = vadd.f32 %v572, %v584
    %v586 = vpop.f32.mrf.mxu0
    %587 = vdwg.mxu0
    %588 = vmatpush.bf16.msra.mxu0 %v209
    %589 = vmatpush.bf16.msra.mxu0 %v207
    %590 = vmatpush.bf16.msra.mxu0 %v205
    %591 = vmatpush.bf16.msra.mxu0 %v203
    %592 = vmatpush.bf16.msra.mxu0 %v201
    %593 = vmatpush.bf16.msra.mxu0 %v199
    %594 = vmatpush.bf16.msra.mxu0 %v197
    %595 = vmatpush.bf16.msra.mxu0 %v195
    %596 = vmatmul.bf16.gmra.mxu0 %v560
    %v597 = vpop.f32.mrf.mxu0
    %v598 = vadd.f32 0.0, %v597
    %v599 = vpop.f32.mrf.mxu0
    %600 = vdwg.mxu0
    %601 = vmatpush.bf16.msra.mxu0 %v225
    %602 = vmatpush.bf16.msra.mxu0 %v223
    %603 = vmatpush.bf16.msra.mxu0 %v221
    %604 = vmatpush.bf16.msra.mxu0 %v219
    %605 = vmatpush.bf16.msra.mxu0 %v217
    %606 = vmatpush.bf16.msra.mxu0 %v215
    %607 = vmatpush.bf16.msra.mxu0 %v213
    %608 = vmatpush.bf16.msra.mxu0 %v211
    %609 = vmatmul.bf16.gmra.mxu0 %v561
    %v610 = vpop.f32.mrf.mxu0
    %v611 = vadd.f32 %v598, %v610
    %v612 = vpop.f32.mrf.mxu0
    %613 = vdwg.mxu0
    %s614 = scalar_lea.vmem [#allocation2], 80
    %v615 = vld [vmem:[%s614] sm:$0xff]
    %v616 = vld [vmem:[%s614 + $0x8] sm:$0xff]
    %v617 = vadd.f32 %v615, %v585
    %v618 = vadd.f32 %v616, %v611
    %v619 = vtanh.pop %v617
    %v620 = vtanh.pop %v618
    %v621 = vpack.c.bf16 %v619, %v619
    %v622 = vpack.c.bf16 %v620, %v620
    %623 = vmatpush.bf16.msra.mxu0 %v208
    %624 = vmatpush.bf16.msra.mxu0 %v206
    %625 = vmatpush.bf16.msra.mxu0 %v204
    %626 = vmatpush.bf16.msra.mxu0 %v202
    %627 = vmatpush.bf16.msra.mxu0 %v200
    %628 = vmatpush.bf16.msra.mxu0 %v198
    %629 = vmatpush.bf16.msra.mxu0 %v196
    %630 = vmatpush.bf16.msra.mxu0 %v194
    %631 = vmatmul.bf16.gmra.mxu0 %v621
    %v632 = vpop.f32.mrf.mxu0
    %v633 = vadd.f32 0.0, %v632
    %v634 = vpop.f32.mrf.mxu0
    %635 = vdwg.mxu0
    %636 = vmatpush.bf16.msra.mxu0 %v224
    %637 = vmatpush.bf16.msra.mxu0 %v222
    %638 = vmatpush.bf16.msra.mxu0 %v220
    %639 = vmatpush.bf16.msra.mxu0 %v218
    %640 = vmatpush.bf16.msra.mxu0 %v216
    %641 = vmatpush.bf16.msra.mxu0 %v214
    %642 = vmatpush.bf16.msra.mxu0 %v212
    %643 = vmatpush.bf16.msra.mxu0 %v210
    %644 = vmatmul.bf16.gmra.mxu0 %v622
    %v645 = vpop.f32.mrf.mxu0
    %v646 = vadd.f32 %v633, %v645
    %v647 = vpop.f32.mrf.mxu0
    %648 = vdwg.mxu0
    %649 = vmatpush.bf16.msra.mxu0 %v209
    %650 = vmatpush.bf16.msra.mxu0 %v207
    %651 = vmatpush.bf16.msra.mxu0 %v205
    %652 = vmatpush.bf16.msra.mxu0 %v203
    %653 = vmatpush.bf16.msra.mxu0 %v201
    %654 = vmatpush.bf16.msra.mxu0 %v199
    %655 = vmatpush.bf16.msra.mxu0 %v197
    %656 = vmatpush.bf16.msra.mxu0 %v195
    %657 = vmatmul.bf16.gmra.mxu0 %v621
    %v658 = vpop.f32.mrf.mxu0
    %v659 = vadd.f32 0.0, %v658
    %v660 = vpop.f32.mrf.mxu0
    %661 = vdwg.mxu0
    %662 = vmatpush.bf16.msra.mxu0 %v225
    %663 = vmatpush.bf16.msra.mxu0 %v223
    %664 = vmatpush.bf16.msra.mxu0 %v221
    %665 = vmatpush.bf16.msra.mxu0 %v219
    %666 = vmatpush.bf16.msra.mxu0 %v217
    %667 = vmatpush.bf16.msra.mxu0 %v215
    %668 = vmatpush.bf16.msra.mxu0 %v213
    %669 = vmatpush.bf16.msra.mxu0 %v211
    %670 = vmatmul.bf16.gmra.mxu0 %v622
    %v671 = vpop.f32.mrf.mxu0
    %v672 = vadd.f32 %v659, %v671
    %v673 = vpop.f32.mrf.mxu0
    %674 = vdwg.mxu0
    %s675 = scalar_lea.vmem [#allocation2], 96
    %v676 = vld [vmem:[%s675] sm:$0xff]
    %v677 = vld [vmem:[%s675 + $0x8] sm:$0xff]
    %v678 = vadd.f32 %v676, %v646
    %v679 = vadd.f32 %v677, %v672
    %v680 = vtanh.pop %v678
    %v681 = vtanh.pop %v679
    %v682 = vpack.c.bf16 %v680, %v680
    %v683 = vpack.c.bf16 %v681, %v681
    %684 = vmatpush.bf16.msra.mxu0 %v208
    %685 = vmatpush.bf16.msra.mxu0 %v206
    %686 = vmatpush.bf16.msra.mxu0 %v204
    %687 = vmatpush.bf16.msra.mxu0 %v202
    %688 = vmatpush.bf16.msra.mxu0 %v200
    %689 = vmatpush.bf16.msra.mxu0 %v198
    %690 = vmatpush.bf16.msra.mxu0 %v196
    %691 = vmatpush.bf16.msra.mxu0 %v194
    %692 = vmatmul.bf16.gmra.mxu0 %v682
    %v693 = vpop.f32.mrf.mxu0
    %v694 = vadd.f32 0.0, %v693
    %v695 = vpop.f32.mrf.mxu0
    %696 = vdwg.mxu0
    %697 = vmatpush.bf16.msra.mxu0 %v224
    %698 = vmatpush.bf16.msra.mxu0 %v222
    %699 = vmatpush.bf16.msra.mxu0 %v220
    %700 = vmatpush.bf16.msra.mxu0 %v218
    %701 = vmatpush.bf16.msra.mxu0 %v216
    %702 = vmatpush.bf16.msra.mxu0 %v214
    %703 = vmatpush.bf16.msra.mxu0 %v212
    %704 = vmatpush.bf16.msra.mxu0 %v210
    %705 = vmatmul.bf16.gmra.mxu0 %v683
    %v706 = vpop.f32.mrf.mxu0
    %v707 = vadd.f32 %v694, %v706
    %v708 = vpop.f32.mrf.mxu0
    %709 = vdwg.mxu0
    %710 = vmatpush.bf16.msra.mxu0 %v209
    %711 = vmatpush.bf16.msra.mxu0 %v207
    %712 = vmatpush.bf16.msra.mxu0 %v205
    %713 = vmatpush.bf16.msra.mxu0 %v203
    %714 = vmatpush.bf16.msra.mxu0 %v201
    %715 = vmatpush.bf16.msra.mxu0 %v199
    %716 = vmatpush.bf16.msra.mxu0 %v197
    %717 = vmatpush.bf16.msra.mxu0 %v195
    %718 = vmatmul.bf16.gmra.mxu0 %v682
    %v719 = vpop.f32.mrf.mxu0
    %v720 = vadd.f32 0.0, %v719
    %v721 = vpop.f32.mrf.mxu0
    %722 = vdwg.mxu0
    %723 = vmatpush.bf16.msra.mxu0 %v225
    %724 = vmatpush.bf16.msra.mxu0 %v223
    %725 = vmatpush.bf16.msra.mxu0 %v221
    %726 = vmatpush.bf16.msra.mxu0 %v219
    %727 = vmatpush.bf16.msra.mxu0 %v217
    %728 = vmatpush.bf16.msra.mxu0 %v215
    %729 = vmatpush.bf16.msra.mxu0 %v213
    %730 = vmatpush.bf16.msra.mxu0 %v211
    %731 = vmatmul.bf16.gmra.mxu0 %v683
    %v732 = vpop.f32.mrf.mxu0
    %v733 = vadd.f32 %v720, %v732
    %v734 = vpop.f32.mrf.mxu0
    %735 = vdwg.mxu0
    %s736 = scalar_lea.vmem [#allocation2], 112
    %v737 = vld [vmem:[%s736] sm:$0xff]
    %v738 = vld [vmem:[%s736 + $0x8] sm:$0xff]
    %v739 = vadd.f32 %v737, %v707
    %v740 = vadd.f32 %v738, %v733
    %v741 = vtanh.pop %v739
    %v742 = vtanh.pop %v740
    %v743 = vpack.c.bf16 %v741, %v741
    %v744 = vpack.c.bf16 %v742, %v742
    %v745 = vld [vmem:[#allocation7] sm:$0xf]
    %v746 = vld [vmem:[#allocation7 + $0x4] sm:$0xf]
    %v747 = vld [vmem:[#allocation7 + $0x8] sm:$0xf]
    %v748 = vld [vmem:[#allocation7 + $0xc] sm:$0xf]
    %v749 = vld [vmem:[#allocation7 + $0x10] sm:$0xf]
    %v750 = vld [vmem:[#allocation7 + $0x14] sm:$0xf]
    %v751 = vld [vmem:[#allocation7 + $0x18] sm:$0xf]
    %v752 = vld [vmem:[#allocation7 + $0x1c] sm:$0xf]
    %v753 = vld [vmem:[#allocation7 + $0x20] sm:$0xf]
    %v754 = vld [vmem:[#allocation7 + $0x24] sm:$0xf]
    %v755 = vld [vmem:[#allocation7 + $0x28] sm:$0xf]
    %v756 = vld [vmem:[#allocation7 + $0x2c] sm:$0xf]
    %v757 = vld [vmem:[#allocation7 + $0x30] sm:$0xf]
    %v758 = vld [vmem:[#allocation7 + $0x34] sm:$0xf]
    %v759 = vld [vmem:[#allocation7 + $0x38] sm:$0xf]
    %v760 = vld [vmem:[#allocation7 + $0x3c] sm:$0xf]
    %v761 = vld [vmem:[#allocation7 + $0x40] sm:$0xf]
    %v762 = vld [vmem:[#allocation7 + $0x44] sm:$0xf]
    %v763 = vld [vmem:[#allocation7 + $0x48] sm:$0xf]
    %v764 = vld [vmem:[#allocation7 + $0x4c] sm:$0xf]
    %v765 = vld [vmem:[#allocation7 + $0x50] sm:$0xf]
    %v766 = vld [vmem:[#allocation7 + $0x54] sm:$0xf]
    %v767 = vld [vmem:[#allocation7 + $0x58] sm:$0xf]
    %v768 = vld [vmem:[#allocation7 + $0x5c] sm:$0xf]
    %v769 = vld [vmem:[#allocation7 + $0x60] sm:$0xf]
    %v770 = vld [vmem:[#allocation7 + $0x64] sm:$0xf]
    %v771 = vld [vmem:[#allocation7 + $0x68] sm:$0xf]
    %v772 = vld [vmem:[#allocation7 + $0x6c] sm:$0xf]
    %v773 = vld [vmem:[#allocation7 + $0x70] sm:$0xf]
    %v774 = vld [vmem:[#allocation7 + $0x74] sm:$0xf]
    %v775 = vld [vmem:[#allocation7 + $0x78] sm:$0xf]
    %v776 = vld [vmem:[#allocation7 + $0x7c] sm:$0xf]
    %v777 = vld [vmem:[%s3] sm:$0x1]
    %v779 = vperm.slane %v777, 0
    %v813 = vunpack.c.l.b16 %v745
    %v814 = vunpack.c.l.b16 %v746
    %v815 = vunpack.c.l.b16 %v747
    %v816 = vunpack.c.l.b16 %v748
    %v817 = vunpack.c.l.b16 %v749
    %v818 = vunpack.c.l.b16 %v750
    %v819 = vunpack.c.l.b16 %v751
    %v820 = vunpack.c.l.b16 %v752
    %v821 = vunpack.c.l.b16 %v753
    %v822 = vunpack.c.l.b16 %v754
    %v823 = vunpack.c.l.b16 %v755
    %v824 = vunpack.c.l.b16 %v756
    %v825 = vunpack.c.l.b16 %v757
    %v826 = vunpack.c.l.b16 %v758
    %v827 = vunpack.c.l.b16 %v759
    %v828 = vunpack.c.l.b16 %v760
    %v829 = vunpack.c.l.b16 %v761
    %v830 = vunpack.c.l.b16 %v762
    %v831 = vunpack.c.l.b16 %v763
    %v832 = vunpack.c.l.b16 %v764
    %v833 = vunpack.c.l.b16 %v765
    %v834 = vunpack.c.l.b16 %v766
    %v835 = vunpack.c.l.b16 %v767
    %v836 = vunpack.c.l.b16 %v768
    %v837 = vunpack.c.l.b16 %v769
    %v838 = vunpack.c.l.b16 %v770
    %v839 = vunpack.c.l.b16 %v771
    %v840 = vunpack.c.l.b16 %v772
    %v841 = vunpack.c.l.b16 %v773
    %v842 = vunpack.c.l.b16 %v774
    %v843 = vunpack.c.l.b16 %v775
    %v844 = vunpack.c.l.b16 %v776
    %v845 = vpack.c.b16 %v814, %v813
    %v846 = vpack.c.b16 %v816, %v815
    %v847 = vpack.c.b16 %v818, %v817
    %v848 = vpack.c.b16 %v820, %v819
    %v849 = vpack.c.b16 %v822, %v821
    %v850 = vpack.c.b16 %v824, %v823
    %v851 = vpack.c.b16 %v826, %v825
    %v852 = vpack.c.b16 %v828, %v827
    %v853 = vpack.c.b16 %v830, %v829
    %v854 = vpack.c.b16 %v832, %v831
    %v855 = vpack.c.b16 %v834, %v833
    %v856 = vpack.c.b16 %v836, %v835
    %v857 = vpack.c.b16 %v838, %v837
    %v858 = vpack.c.b16 %v840, %v839
    %v859 = vpack.c.b16 %v842, %v841
    %v860 = vpack.c.b16 %v844, %v843
    %877 = vmatpush.bf16.msra.mxu0 %v852
    %878 = vmatpush.bf16.msra.mxu0 %v851
    %879 = vmatpush.bf16.msra.mxu0 %v850
    %880 = vmatpush.bf16.msra.mxu0 %v849
    %881 = vmatpush.bf16.msra.mxu0 %v848
    %882 = vmatpush.bf16.msra.mxu0 %v847
    %883 = vmatpush.bf16.msra.mxu0 %v846
    %884 = vmatpush.bf16.msra.mxu0 %v845
    %885 = vmatmul.bf16.gmra.mxu0 %v743
    %v886 = vpop.f32.mrf.mxu0
    %v887 = vadd.f32 %v779, %v886
    %v888 = vpop.f32.mrf.mxu0
    %889 = vdwg.mxu0
    %890 = vmatpush.bf16.msra.mxu0 %v860
    %891 = vmatpush.bf16.msra.mxu0 %v859
    %892 = vmatpush.bf16.msra.mxu0 %v858
    %893 = vmatpush.bf16.msra.mxu0 %v857
    %894 = vmatpush.bf16.msra.mxu0 %v856
    %895 = vmatpush.bf16.msra.mxu0 %v855
    %896 = vmatpush.bf16.msra.mxu0 %v854
    %897 = vmatpush.bf16.msra.mxu0 %v853
    %898 = vmatmul.bf16.gmra.mxu0 %v744
    %v899 = vpop.f32.mrf.mxu0
    %v900 = vadd.f32 %v887, %v899
    %v901 = vpop.f32.mrf.mxu0
    %902 = vdwg.mxu0
    %v903 = vxor.u32 %v900, 2147483648
    %v904 = vmul.f32 %v903, 1.442695
    %v905 = vpow.pop %v904
    %v906 = vadd.f32 %v905, 1.0
    %v907 = vrcp.pop %v906
    %v908 = vmul.f32 %v906, %v907
    %v909 = vsub.f32 1.0, %v908
    %v910 = vmul.f32 %v907, %v909
    %v911 = vadd.f32 %v907, %v910
    %vm912 = vweird.f32 %v906
    %vm913 = vweird.f32 %v907
    %vm914 = vmor %vm912, %vm913
    %v915 = vsel %vm914, %v907, %v911
    %v916 = vand.u32 2147483647, %v906
    %vm917 = vcmp.eq.f32.partialorder %v916, 8.507059e+37
    %v918 = vand.u32 %v906, 2147483648
    %v919 = vor.u32 1.1754944e-38, %v918
    %v920 = vsel %vm917, %v919, %v915
    %v921 = vmul.f32 1.0, %v920
    %922 = vst [vmem:[#allocation8] sm:$0xff] %v921
    // Predicated region
    $region30: #{tpu_custom_call.1} parent=1 // pred_check
      _
    $region31: #{tpu_custom_call.1} parent=1 // pred_check_branch
      %924 = sbr.rel (0) target = $region33
    $region32: #{tpu_custom_call.1} parent=1 // pred_region
      %926 = vsyncadd [#allocation4], 0
      %s928 = sshll.u32 [#allocation8], 4
      %s929 = int_to_ptr.vmem [resolvable:$true] %s928
      %s930 = sshll.u32 %s4, 4
      %s931 = int_to_ptr.hbm [resolvable:$true] %s930
      %933 = dma.vmem_to_hbm [thread:$0]  %s929, 128, %s931, [#allocation4]
    $region33: #{tpu_custom_call.1} parent=1 // pred_fallthru
      _
    // Predicated region
    $region34: #{tpu_custom_call.1} parent=1 // pred_check
      _
    $region35: #{tpu_custom_call.1} parent=1 // pred_check_branch
      %935 = sbr.rel (0) target = $region37
    $region36: #{tpu_custom_call.1} parent=1 // pred_region
      %937 = dma.done [#allocation4], 128
    $region37: #{tpu_custom_call.1} parent=1 // pred_fallthru
      _
    %938 = vsyncpa [#allocation3], 1
    %939 = vsyncpa [#allocation6], 1
    %940 = vsyncpa [#allocation4], 1

</llo_original>
